<compile_context>
chip_gen: v5e
topology: v5e:2x2
jax: 0.10.0
libtpu: 0.0.40
codegen_flags: <defaults>
</compile_context>

<pallas_src>
import functools

import jax
import jax.numpy as jnp
import numpy as np
from jax import lax
from jax.experimental import pallas as pl
from jax.experimental.pallas import tpu as pltpu


def _round_up(a, m):
    return -(-a // m) * m


def _net_kernel(x_ref, w1_ref, b1_ref, w2_ref, b2_ref, w3_ref, b3_ref, out_ref,
                *, n_outs):
    x = x_ref[...]

    # Fused layer 1: both branches consume x (w1 = [cw1 | aw1]).
    h = jnp.dot(x, w1_ref[...], preferred_element_type=jnp.float32) + b1_ref[...]
    h = jnp.maximum(h, 0.0)

    # Fused layer 2: block-diagonal keeps the branches independent.
    h = jnp.dot(h.astype(w2_ref.dtype), w2_ref[...],
                preferred_element_type=jnp.float32) + b2_ref[...]
    h = jnp.maximum(h, 0.0)

    # Fused, lane-padded layer 3: cols 0..n_outs-1 = actor logits, col n_outs = value,
    # remaining cols are zero padding (sliced off in the wrapper).
    z = jnp.dot(h.astype(w3_ref.dtype), w3_ref[...],
                preferred_element_type=jnp.float32) + b3_ref[...]

    # Stable softmax over the logit lanes only; all operands stay at fixed lane offsets.
    lane = lax.broadcasted_iota(jnp.int32, z.shape, 1)
    is_logit = lane < n_outs
    zm = jnp.where(is_logit, z, -1e30)                      # mask non-logit lanes
    m = jnp.max(zm, axis=-1, keepdims=True)
    e = jnp.exp(zm - m)                                     # padded lanes underflow to 0
    denom = jnp.sum(e, axis=-1, keepdims=True)
    r = pl.reciprocal(denom, approx=True)                   # EUP slot
    r = r * (2.0 - denom * r)                               # one Newton step -> ~f32 exact
    probs = e * r

    # probs in logit lanes, raw z (the critic value at col n_outs) elsewhere.
    out_ref[...] = jnp.where(is_logit, probs, z).astype(out_ref.dtype)


def fuse_params(p):
    """Build block-structured fused weights (layer-3 output lane-padded to 128)."""
    n_hidden = p["cw1"].shape[1]
    n_outs = p["aw3"].shape[1]
    out_cols = max(128, _round_up(n_outs + 1, 128))

    w1 = jnp.concatenate([p["cw1"], p["aw1"]], axis=1)            # [n_in, 2H]
    b1 = jnp.concatenate([p["cb1"], p["ab1"]], axis=1)            # [1, 2H]

    w2 = jnp.zeros((2 * n_hidden, 2 * n_hidden), jnp.float32)     # blockdiag
    w2 = w2.at[:n_hidden, :n_hidden].set(p["cw2"])
    w2 = w2.at[n_hidden:, n_hidden:].set(p["aw2"])
    b2 = jnp.concatenate([p["cb2"], p["ab2"]], axis=1)            # [1, 2H]

    # Lane-dense layer 3: actor logits first (lane offset 0), critic value at col n_outs.
    w3 = jnp.zeros((2 * n_hidden, out_cols), jnp.float32)
    w3 = w3.at[n_hidden:, :n_outs].set(p["aw3"])
    w3 = w3.at[:n_hidden, n_outs:n_outs + 1].set(p["cw3"])
    b3 = jnp.zeros((1, out_cols), jnp.float32)
    b3 = b3.at[:, :n_outs].set(p["ab3"])
    b3 = b3.at[:, n_outs:n_outs + 1].set(p["cb3"])

    return dict(w1=w1, b1=b1, w2=w2, b2=b2, w3=w3, b3=b3)


def net_forward(x, fused, n_outs, *, max_tile_b=2048, use_bf16=False):
    """x: [batch, n_inputs] f32.  fused: output of fuse_params.  -> (probs, value)."""
    batch, n_inputs = x.shape
    two_h = fused["w1"].shape[1]
    out_cols = fused["w3"].shape[1]

    # Balanced batch tiles: never round a batch up to a full extra tile.
    pb = _round_up(batch, 8)
    num_tiles = max(1, -(-pb // max_tile_b))
    if num_tiles == 1 and pb >= 16:
        num_tiles = 2                      # keep >=2 parallel steps for v7x's two TCs
    if num_tiles > 1 and num_tiles % 2 == 1:
        num_tiles += 1                     # even split across the two TCs
    tile_b = _round_up(-(-pb // num_tiles), 8)
    pb = tile_b * num_tiles
    if pb != batch:
        x = jnp.pad(x, ((0, pb - batch), (0, 0)))   # zero rows are harmless

    w1, w2, w3 = fused["w1"], fused["w2"], fused["w3"]
    if use_bf16:
        # bf16 MXU operands (v6e/v7x); biases / ReLU / softmax stay in f32.
        x = x.astype(jnp.bfloat16)
        w1 = w1.astype(jnp.bfloat16)
        w2 = w2.astype(jnp.bfloat16)
        w3 = w3.astype(jnp.bfloat16)

    def w_spec(arr):
        # Weights/biases stay resident in VMEM across all batch tiles.
        return pl.BlockSpec(arr.shape, lambda i: (0, 0))

    itemsize = 2 if use_bf16 else 4
    n_param = sum(int(np.prod(v.shape)) for v in (w1, w2, w3)) \
        + sum(int(np.prod(fused[k].shape)) for k in ("b1", "b2", "b3"))
    cost = pl.CostEstimate(
        flops=2 * pb * (n_inputs * two_h + two_h * two_h + two_h * out_cols),
        transcendentals=pb * (n_outs + 1),
        bytes_accessed=itemsize * (pb * n_inputs + n_param) + 4 * pb * out_cols,
    )

    kernel = functools.partial(_net_kernel, n_outs=n_outs)

    out = pl.pallas_call(
        kernel,
        out_shape=jax.ShapeDtypeStruct((pb, out_cols), jnp.float32),
        grid=(num_tiles,),
        in_specs=[
            pl.BlockSpec((tile_b, n_inputs), lambda i: (i, 0)),
            w_spec(w1),
            w_spec(fused["b1"]),
            w_spec(w2),
            w_spec(fused["b2"]),
            w_spec(w3),
            w_spec(fused["b3"]),
        ],
        out_specs=pl.BlockSpec((tile_b, out_cols), lambda i: (i, 0)),
        compiler_params=pltpu.CompilerParams(
            dimension_semantics=("parallel",),
            vmem_limit_bytes=64 << 20),
        cost_estimate=cost,
    )(x, w1, fused["b1"], w2, fused["b2"], w3, fused["b3"])

    probs = out[:batch, :n_outs]
    value = out[:batch, n_outs:n_outs + 1]
    return probs, value


def init_params(key, n_inputs, n_hidden, n_outs):
    """Deterministic synthetic init (shapes match the nn.Linear layers of Net).

    Weights are stored as [in_features, out_features] (transpose of PyTorch's
    nn.Linear weight) so the kernel computes y = x @ W + b directly.
    """
    ks = jax.random.split(key, 12)

    def lin(kw, kb, fan_in, fan_out):
        bound = 1.0 / np.sqrt(fan_in)
        w = jax.random.uniform(kw, (fan_in, fan_out), jnp.float32, -bound, bound)
        b = jax.random.uniform(kb, (1, fan_out), jnp.float32, -bound, bound)
        return w, b

    cw1, cb1 = lin(ks[0], ks[1], n_inputs, n_hidden)
    cw2, cb2 = lin(ks[2], ks[3], n_hidden, n_hidden)
    cw3, cb3 = lin(ks[4], ks[5], n_hidden, 1)
    aw1, ab1 = lin(ks[6], ks[7], n_inputs, n_hidden)
    aw2, ab2 = lin(ks[8], ks[9], n_hidden, n_hidden)
    aw3, ab3 = lin(ks[10], ks[11], n_hidden, n_outs)
    return dict(cw1=cw1, cb1=cb1, cw2=cw2, cb2=cb2, cw3=cw3, cb3=cb3,
                aw1=aw1, ab1=ab1, aw2=aw2, ab2=ab2, aw3=aw3, ab3=ab3)


def net_forward_ref(x, p):
    """Pure-JAX reference mirroring the PyTorch forward (unfused)."""
    h = jax.nn.relu(x @ p["cw1"] + p["cb1"])
    h = jax.nn.relu(h @ p["cw2"] + p["cb2"])
    value = h @ p["cw3"] + p["cb3"]
    a = jax.nn.relu(x @ p["aw1"] + p["ab1"])
    a = jax.nn.relu(a @ p["aw2"] + p["ab2"])
    logits = a @ p["aw3"] + p["ab3"]
    probs = jax.nn.softmax(logits, axis=1)
    return probs, value


if __name__ == "__main__":
    # Small shapes consistent with the module: n_inputs=16, n_hidden=32, n_outs=4.
    batch, n_inputs, n_hidden, n_outs = 8, 16, 32, 4

    key = jax.random.PRNGKey(0)
    k_params, k_x = jax.random.split(key)
    params = init_params(k_params, n_inputs, n_hidden, n_outs)
    fused = fuse_params(params)
    x = jax.random.normal(k_x, (batch, n_inputs), jnp.float32)

    probs, value = net_forward(x, fused, n_outs)
    jax.block_until_ready((probs, value))

    probs_ref, value_ref = net_forward_ref(x, params)
    np.testing.assert_allclose(np.asarray(probs), np.asarray(probs_ref),
                               rtol=1e-5, atol=1e-5)
    np.testing.assert_allclose(np.asarray(value), np.asarray(value_ref),
                               rtol=1e-5, atol=1e-5)
    np.testing.assert_allclose(np.asarray(probs).sum(axis=1),
                               np.ones(batch), rtol=1e-5, atol=1e-5)

    # Also exercise a larger, non-power-of-two batch (multi-tile, balanced-grid path).
    xb = jax.random.normal(jax.random.PRNGKey(1), (300, n_inputs), jnp.float32)
    pb_probs, pb_value = net_forward(xb, fused, n_outs)
    jax.block_until_ready((pb_probs, pb_value))
    pr_ref, va_ref = net_forward_ref(xb, params)
    np.testing.assert_allclose(np.asarray(pb_probs), np.asarray(pr_ref),
                               rtol=1e-5, atol=1e-5)
    np.testing.assert_allclose(np.asarray(pb_value), np.asarray(va_ref),
                               rtol=1e-5, atol=1e-5)

    print("KERNEL_OK")
</pallas_src>

<mosaic_0001>
module attributes {stable_mosaic.version = 11 : i64} {
  func.func @_net_kernel(%arg0: i32, %arg1: memref<8x16xf32, #tpu.memory_space<vmem>>, %arg2: memref<16x64xf32, #tpu.memory_space<vmem>>, %arg3: memref<1x64xf32, #tpu.memory_space<vmem>>, %arg4: memref<64x64xf32, #tpu.memory_space<vmem>>, %arg5: memref<1x64xf32, #tpu.memory_space<vmem>>, %arg6: memref<64x128xf32, #tpu.memory_space<vmem>>, %arg7: memref<1x128xf32, #tpu.memory_space<vmem>>, %arg8: memref<8x128xf32, #tpu.memory_space<vmem>>) attributes {dimension_semantics = [#tpu.dimension_semantics<parallel>], iteration_bounds = array<i64: 1>, scalar_prefetch = 0 : i64, scratch_operands = 0 : i64, tpu.core_type = #tpu.core_type<tc>, window_params = [{transform_indices = @transform_0, window_bounds = array<i64: 8, 16>}, {pipeline_mode = #tpu.pipeline_mode<synchronous>, transform_indices = @transform_1, window_bounds = array<i64: 16, 64>}, {pipeline_mode = #tpu.pipeline_mode<synchronous>, transform_indices = @transform_2, window_bounds = array<i64: 1, 64>}, {pipeline_mode = #tpu.pipeline_mode<synchronous>, transform_indices = @transform_3, window_bounds = array<i64: 64, 64>}, {pipeline_mode = #tpu.pipeline_mode<synchronous>, transform_indices = @transform_4, window_bounds = array<i64: 1, 64>}, {pipeline_mode = #tpu.pipeline_mode<synchronous>, transform_indices = @transform_5, window_bounds = array<i64: 64, 128>}, {pipeline_mode = #tpu.pipeline_mode<synchronous>, transform_indices = @transform_6, window_bounds = array<i64: 1, 128>}, {transform_indices = @transform_7, window_bounds = array<i64: 8, 128>}]} {
    %c0 = arith.constant 0 : index
    %c0_0 = arith.constant 0 : index
    %0 = vector.load %arg1[%c0, %c0_0] : memref<8x16xf32, #tpu.memory_space<vmem>>, vector<8x16xf32>
    %c0_1 = arith.constant 0 : index
    %c0_2 = arith.constant 0 : index
    %1 = vector.load %arg2[%c0_1, %c0_2] : memref<16x64xf32, #tpu.memory_space<vmem>>, vector<16x64xf32>
    %cst = arith.constant dense<0.000000e+00> : vector<8x64xf32>
    %2 = tpu.matmul %0, %1, %cst {dimension_numbers = #tpu.dot_dimension_numbers<[1], [0], [0], [1], [0, 0, 1, 1], [], []>} : vector<8x16xf32>, vector<16x64xf32>, vector<8x64xf32> -> vector<8x64xf32>
    %c0_3 = arith.constant 0 : index
    %c0_4 = arith.constant 0 : index
    %3 = vector.load %arg3[%c0_3, %c0_4] : memref<1x64xf32, #tpu.memory_space<vmem>>, vector<1x64xf32>
    %4 = vector.broadcast %3 : vector<1x64xf32> to vector<8x64xf32>
    %5 = arith.addf %2, %4 : vector<8x64xf32>
    %cst_5 = arith.constant 0.000000e+00 : f32
    %6 = vector.broadcast %cst_5 : f32 to vector<8x64xf32>
    %7 = arith.maximumf %5, %6 : vector<8x64xf32>
    %c0_6 = arith.constant 0 : index
    %c0_7 = arith.constant 0 : index
    %8 = vector.load %arg4[%c0_6, %c0_7] : memref<64x64xf32, #tpu.memory_space<vmem>>, vector<64x64xf32>
    %cst_8 = arith.constant dense<0.000000e+00> : vector<8x64xf32>
    %9 = tpu.matmul %7, %8, %cst_8 {dimension_numbers = #tpu.dot_dimension_numbers<[1], [0], [0], [1], [0, 0, 1, 1], [], []>} : vector<8x64xf32>, vector<64x64xf32>, vector<8x64xf32> -> vector<8x64xf32>
    %c0_9 = arith.constant 0 : index
    %c0_10 = arith.constant 0 : index
    %10 = vector.load %arg5[%c0_9, %c0_10] : memref<1x64xf32, #tpu.memory_space<vmem>>, vector<1x64xf32>
    %11 = vector.broadcast %10 : vector<1x64xf32> to vector<8x64xf32>
    %12 = arith.addf %9, %11 : vector<8x64xf32>
    %cst_11 = arith.constant 0.000000e+00 : f32
    %13 = vector.broadcast %cst_11 : f32 to vector<8x64xf32>
    %14 = arith.maximumf %12, %13 : vector<8x64xf32>
    %c0_12 = arith.constant 0 : index
    %c0_13 = arith.constant 0 : index
    %15 = vector.load %arg6[%c0_12, %c0_13] : memref<64x128xf32, #tpu.memory_space<vmem>>, vector<64x128xf32>
    %cst_14 = arith.constant dense<0.000000e+00> : vector<8x128xf32>
    %16 = tpu.matmul %14, %15, %cst_14 {dimension_numbers = #tpu.dot_dimension_numbers<[1], [0], [0], [1], [0, 0, 1, 1], [], []>} : vector<8x64xf32>, vector<64x128xf32>, vector<8x128xf32> -> vector<8x128xf32>
    %c0_15 = arith.constant 0 : index
    %c0_16 = arith.constant 0 : index
    %17 = vector.load %arg7[%c0_15, %c0_16] : memref<1x128xf32, #tpu.memory_space<vmem>>, vector<1x128xf32>
    %18 = vector.broadcast %17 : vector<1x128xf32> to vector<8x128xf32>
    %19 = arith.addf %16, %18 : vector<8x128xf32>
    %20 = tpu.iota {dimensions = array<i32: 1>} : vector<8x128xi32>
    %c4_i32 = arith.constant 4 : i32
    %21 = vector.broadcast %c4_i32 : i32 to vector<8x128xi32>
    %22 = arith.cmpi slt, %20, %21 : vector<8x128xi32>
    %cst_17 = arith.constant -1.000000e+30 : f32
    %23 = vector.broadcast %cst_17 : f32 to vector<8x128xf32>
    %24 = arith.select %22, %19, %23 : vector<8x128xi1>, vector<8x128xf32>
    %cst_18 = arith.constant dense<0xFF800000> : vector<8xf32>
    %25 = vector.multi_reduction <maximumf>, %24, %cst_18 [1] : vector<8x128xf32> to vector<8xf32>
    %26 = vector.shape_cast %25 : vector<8xf32> to vector<8x1xf32>
    %27 = vector.broadcast %26 : vector<8x1xf32> to vector<8x128xf32>
    %28 = arith.subf %24, %27 : vector<8x128xf32>
    %29 = math.exp %28 : vector<8x128xf32>
    %cst_19 = arith.constant dense<0.000000e+00> : vector<8xf32>
    %30 = vector.multi_reduction <add>, %29, %cst_19 [1] : vector<8x128xf32> to vector<8xf32>
    %31 = vector.shape_cast %30 : vector<8xf32> to vector<8x1xf32>
    %32 = tpu.reciprocal %31 {approx = true} : vector<8x1xf32> -> vector<8x1xf32>
    %33 = arith.mulf %31, %32 : vector<8x1xf32>
    %cst_20 = arith.constant 2.000000e+00 : f32
    %34 = vector.broadcast %cst_20 : f32 to vector<8x1xf32>
    %35 = arith.subf %34, %33 : vector<8x1xf32>
    %36 = arith.mulf %32, %35 : vector<8x1xf32>
    %37 = vector.broadcast %36 : vector<8x1xf32> to vector<8x128xf32>
    %38 = arith.mulf %29, %37 : vector<8x128xf32>
    %39 = arith.select %22, %38, %19 : vector<8x128xi1>, vector<8x128xf32>
    %c0_21 = arith.constant 0 : index
    %c0_22 = arith.constant 0 : index
    %40 = vector.load %arg8[%c0_21, %c0_22] : memref<8x128xf32, #tpu.memory_space<vmem>>, vector<8x128xf32>
    tpu.vector_store %arg8[%c0_21, %c0_22], %39 {strides = array<i32>} : memref<8x128xf32, #tpu.memory_space<vmem>>, vector<8x128xf32>,
    return
  }
  func.func @transform_0(%arg0: i32) -> (i32, i32) {
    %c0_i32 = arith.constant 0 : i32
    %c0_i32_0 = arith.constant 0 : i32
    return %arg0, %c0_i32 : i32, i32
  }
  func.func @transform_1(%arg0: i32) -> (i32, i32) {
    %c0_i32 = arith.constant 0 : i32
    %c0_i32_0 = arith.constant 0 : i32
    %c0_i32_1 = arith.constant 0 : i32
    return %c0_i32, %c0_i32_0 : i32, i32
  }
  func.func @transform_2(%arg0: i32) -> (i32, i32) {
    %c0_i32 = arith.constant 0 : i32
    %c0_i32_0 = arith.constant 0 : i32
    %c0_i32_1 = arith.constant 0 : i32
    return %c0_i32, %c0_i32_0 : i32, i32
  }
  func.func @transform_3(%arg0: i32) -> (i32, i32) {
    %c0_i32 = arith.constant 0 : i32
    %c0_i32_0 = arith.constant 0 : i32
    %c0_i32_1 = arith.constant 0 : i32
    return %c0_i32, %c0_i32_0 : i32, i32
  }
  func.func @transform_4(%arg0: i32) -> (i32, i32) {
    %c0_i32 = arith.constant 0 : i32
    %c0_i32_0 = arith.constant 0 : i32
    %c0_i32_1 = arith.constant 0 : i32
    return %c0_i32, %c0_i32_0 : i32, i32
  }
  func.func @transform_5(%arg0: i32) -> (i32, i32) {
    %c0_i32 = arith.constant 0 : i32
    %c0_i32_0 = arith.constant 0 : i32
    %c0_i32_1 = arith.constant 0 : i32
    return %c0_i32, %c0_i32_0 : i32, i32
  }
  func.func @transform_6(%arg0: i32) -> (i32, i32) {
    %c0_i32 = arith.constant 0 : i32
    %c0_i32_0 = arith.constant 0 : i32
    %c0_i32_1 = arith.constant 0 : i32
    return %c0_i32, %c0_i32_0 : i32, i32
  }
  func.func @transform_7(%arg0: i32) -> (i32, i32) {
    %c0_i32 = arith.constant 0 : i32
    %c0_i32_0 = arith.constant 0 : i32
    return %arg0, %c0_i32 : i32, i32
  }
}

</mosaic_0001>

<llo_original>
// kernel: tpu_custom_call.1
$region0: #{tpu_custom_call.1}
  #allocation0 [shape = 'u32[]', space=smem, size = 0x4, offset = 0x4, fixed_abs, tag = 'smem constant byte address 0x4 - core index']
  #allocation1 [shape = 'u32[72,128]{1,0:T(1,128)}', space=vmem, size = 0x9000, scoped, tag = 'internal scratch']
  %s0 = inlined_call_operand.hbm [shape: f32[8,16], index: 0, kind: input, shape index: {}]
  %s1 = inlined_call_operand.hbm [shape: f32[16,64], index: 1, kind: input, shape index: {}]
  %s2 = inlined_call_operand.vmem [shape: f32[1,64], index: 2, kind: input, shape index: {}]
  %s3 = inlined_call_operand.hbm [shape: f32[64,64], index: 3, kind: input, shape index: {}]
  %s4 = inlined_call_operand.vmem [shape: f32[1,64], index: 4, kind: input, shape index: {}]
  %s5 = inlined_call_operand.hbm [shape: f32[64,128], index: 5, kind: input, shape index: {}]
  %s6 = inlined_call_operand.vmem [shape: f32[1,128], index: 6, kind: input, shape index: {}]
  %s7 = inlined_call_operand.hbm [shape: f32[8,128], index: 7, kind: output, shape index: {}]
  %s8 = sld [smem:[#allocation0]]
  $region54: #{tpu_custom_call.1} parent=0
    _
  %s10 = ssub.s32 1, %s8
  %s11 = scalar_select 0, %s10, %s8
  $region1: #{tpu_custom_call.1} parent=0
    #allocation2 [shape = 'u8[4096]{0}', space=vmem, size = 0x1000, scoped, tag = 'input window, operand 0, single buffered']
    #allocation3 [shape = 's32[1]{0}', space=sflag, size = 0x4, scoped, tag = 'scoped memory for tpu_custom_call.1']
    #allocation4 [shape = 's32[1]{0}', space=sflag, size = 0x4, scoped, tag = 'scoped memory for tpu_custom_call.1']
    #allocation5 [shape = 'u8[8192]{0}', space=vmem, size = 0x2000, scoped, tag = 'input window, operand 1, single buffered']
    #allocation6 [shape = 's32[1]{0}', space=sflag, size = 0x4, scoped, tag = 'scoped memory for tpu_custom_call.1']
    #allocation7 [shape = 'u8[32768]{0}', space=vmem, size = 0x8000, scoped, tag = 'input window, operand 3, single buffered']
    #allocation8 [shape = 'u8[32768]{0}', space=vmem, size = 0x8000, scoped, tag = 'input window, operand 5, single buffered']
    #allocation9 [shape = 's32[1]{0}', space=sflag, size = 0x4, scoped, tag = 'scoped memory for tpu_custom_call.1']
    #allocation10 [shape = 'u8[4096]{0}', space=vmem, size = 0x1000, scoped, tag = 'output window, operand 0, single buffered']
    %12 = vsyncpa [#allocation3], 0
    %13 = vsyncpa [#allocation6], 0
    %14 = vsyncpa [#allocation9], 0
    %15 = vsyncpa [#allocation4], 0
    // Predicated region
    $region2: #{tpu_custom_call.1} parent=1 // pred_check
      _
    $region3: #{tpu_custom_call.1} parent=1 // pred_check_branch
      %17 = sbr.rel (0) target = $region5
    $region4: #{tpu_custom_call.1} parent=1 // pred_region
      %19 = vsyncadd [#allocation3], 0
      %s21 = sshll.u32 %s0, 4
      %s22 = int_to_ptr.hbm [resolvable:$true] %s21
      %s23 = sshll.u32 [#allocation2], 4
      %s24 = int_to_ptr.vmem [resolvable:$true] %s23
      %26 = dma.hbm_to_vmem [thread:$0]  %s22, 128, %s24, [#allocation3]
    $region5: #{tpu_custom_call.1} parent=1 // pred_fallthru
      _
    // Predicated region
    $region6: #{tpu_custom_call.1} parent=1 // pred_check
      _
    $region7: #{tpu_custom_call.1} parent=1 // pred_check_branch
      %28 = sbr.rel (0) target = $region9
    $region8: #{tpu_custom_call.1} parent=1 // pred_region
      %30 = vsyncadd [#allocation6], 0
      %s31 = sshll.u32 %s1, 4
      %s32 = int_to_ptr.hbm [resolvable:$true] %s31
      %s33 = sshll.u32 [#allocation5], 4
      %s34 = int_to_ptr.vmem [resolvable:$true] %s33
      %39 = dma.hbm_to_vmem [thread:$0]  %s32, 256, %s34, [#allocation6], 128, 128, 8
    $region9: #{tpu_custom_call.1} parent=1 // pred_fallthru
      _
    // Predicated region
    $region10: #{tpu_custom_call.1} parent=1 // pred_check
      _
    $region11: #{tpu_custom_call.1} parent=1 // pred_check_branch
      %41 = sbr.rel (0) target = $region13
    $region12: #{tpu_custom_call.1} parent=1 // pred_region
      _
    $region13: #{tpu_custom_call.1} parent=1 // pred_fallthru
      _
    // Predicated region
    $region14: #{tpu_custom_call.1} parent=1 // pred_check
      _
    $region15: #{tpu_custom_call.1} parent=1 // pred_check_branch
      %43 = sbr.rel (0) target = $region17
    $region16: #{tpu_custom_call.1} parent=1 // pred_region
      %45 = vsyncadd [#allocation6], 0
      %s46 = sshll.u32 %s3, 4
      %s47 = int_to_ptr.hbm [resolvable:$true] %s46
      %s48 = sshll.u32 [#allocation7], 4
      %s49 = int_to_ptr.vmem [resolvable:$true] %s48
      %54 = dma.hbm_to_vmem [thread:$0]  %s47, 1024, %s49, [#allocation6], 128, 128, 8
    $region17: #{tpu_custom_call.1} parent=1 // pred_fallthru
      _
    // Predicated region
    $region18: #{tpu_custom_call.1} parent=1 // pred_check
      _
    $region19: #{tpu_custom_call.1} parent=1 // pred_check_branch
      %56 = sbr.rel (0) target = $region21
    $region20: #{tpu_custom_call.1} parent=1 // pred_region
      _
    $region21: #{tpu_custom_call.1} parent=1 // pred_fallthru
      _
    // Predicated region
    $region22: #{tpu_custom_call.1} parent=1 // pred_check
      _
    $region23: #{tpu_custom_call.1} parent=1 // pred_check_branch
      %58 = sbr.rel (0) target = $region25
    $region24: #{tpu_custom_call.1} parent=1 // pred_region
      %60 = vsyncadd [#allocation9], 0
      %s61 = sshll.u32 %s5, 4
      %s62 = int_to_ptr.hbm [resolvable:$true] %s61
      %s63 = sshll.u32 [#allocation8], 4
      %s64 = int_to_ptr.vmem [resolvable:$true] %s63
      %69 = dma.hbm_to_vmem [thread:$0]  %s62, 1024, %s64, [#allocation9], 128, 128, 8
    $region25: #{tpu_custom_call.1} parent=1 // pred_fallthru
      _
    // Predicated region
    $region26: #{tpu_custom_call.1} parent=1 // pred_check
      _
    $region27: #{tpu_custom_call.1} parent=1 // pred_check_branch
      %71 = sbr.rel (0) target = $region29
    $region28: #{tpu_custom_call.1} parent=1 // pred_region
      _
    $region29: #{tpu_custom_call.1} parent=1 // pred_fallthru
      _
    // Predicated region
    $region30: #{tpu_custom_call.1} parent=1 // pred_check
      _
    $region31: #{tpu_custom_call.1} parent=1 // pred_check_branch
      %73 = sbr.rel (0) target = $region33
    $region32: #{tpu_custom_call.1} parent=1 // pred_region
      %75 = dma.done [#allocation3], 128
    $region33: #{tpu_custom_call.1} parent=1 // pred_fallthru
      _
    // Predicated region
    $region34: #{tpu_custom_call.1} parent=1 // pred_check
      _
    $region35: #{tpu_custom_call.1} parent=1 // pred_check_branch
      %77 = sbr.rel (0) target = $region37
    $region36: #{tpu_custom_call.1} parent=1 // pred_region
      %79 = dma.done [#allocation6], 256
    $region37: #{tpu_custom_call.1} parent=1 // pred_fallthru
      _
    // Predicated region
    $region38: #{tpu_custom_call.1} parent=1 // pred_check
      _
    $region39: #{tpu_custom_call.1} parent=1 // pred_check_branch
      %81 = sbr.rel (0) target = $region41
    $region40: #{tpu_custom_call.1} parent=1 // pred_region
      %83 = dma.done [#allocation6], 1024
    $region41: #{tpu_custom_call.1} parent=1 // pred_fallthru
      _
    // Predicated region
    $region42: #{tpu_custom_call.1} parent=1 // pred_check
      _
    $region43: #{tpu_custom_call.1} parent=1 // pred_check_branch
      %85 = sbr.rel (0) target = $region45
    $region44: #{tpu_custom_call.1} parent=1 // pred_region
      %87 = dma.done [#allocation9], 1024
    $region45: #{tpu_custom_call.1} parent=1 // pred_fallthru
      _
    %v88 = vld [vmem:[#allocation2] sm:$0xff]
    %v89 = vld [vmem:[#allocation5] sm:$0xff]
    %v90 = vld [vmem:[#allocation5 + $0x8] sm:$0xff]
    %v91 = vld [vmem:[%s2] sm:$0x1]
    %v93 = vperm.slane %v91, 0
    %vm95 = vcmask 130048
    %v97 = vsel %vm95, %v88, 0
    %99 = vmatpush.msra.mxu0 0.0
    %100 = vmatpush.msra.mxu0 0.0
    %101 = vmatpush.msra.mxu0 0.0
    %102 = vmatpush.msra.mxu0 0.0
    %103 = vmatpush.msra.mxu0 0.0
    %104 = vmatpush.msra.mxu0 0.0
    %105 = vmatpush.msra.mxu0 0.0
    %106 = vmatpush.msra.mxu0 0.0
    %107 = vmatpush.msra.mxu0 0.0
    %108 = vmatpush.msra.mxu0 0.0
    %109 = vmatpush.msra.mxu0 0.0
    %110 = vmatpush.msra.mxu0 0.0
    %111 = vmatpush.msra.mxu0 0.0
    %112 = vmatpush.msra.mxu0 0.0
    %113 = vmatpush.msra.mxu0 %v90
    %114 = vmatpush.msra.mxu0 %v89
    %115 = vmatmul.f32.gmra.mxu0 %v97
    %v116 = vpop.f32.mrf.mxu0
    %v117 = vadd.f32 %v93, %v116
    %118 = vdwg.mxu0
    %v119 = vmax.f32 %v117, 0.0
    %v120 = vld [vmem:[#allocation7] sm:$0xff]
    %v121 = vld [vmem:[#allocation7 + $0x8] sm:$0xff]
    %v122 = vld [vmem:[#allocation7 + $0x10] sm:$0xff]
    %v123 = vld [vmem:[#allocation7 + $0x18] sm:$0xff]
    %v124 = vld [vmem:[#allocation7 + $0x20] sm:$0xff]
    %v125 = vld [vmem:[#allocation7 + $0x28] sm:$0xff]
    %v126 = vld [vmem:[#allocation7 + $0x30] sm:$0xff]
    %v127 = vld [vmem:[#allocation7 + $0x38] sm:$0xff]
    %v128 = vld [vmem:[%s4] sm:$0x1]
    %v130 = vperm.slane %v128, 0
    %vm132 = vcmask 523264
    %v134 = vsel %vm132, %v119, 0
    %136 = vmatpush.msra.mxu0 0.0
    %137 = vmatpush.msra.mxu0 0.0
    %138 = vmatpush.msra.mxu0 0.0
    %139 = vmatpush.msra.mxu0 0.0
    %140 = vmatpush.msra.mxu0 0.0
    %141 = vmatpush.msra.mxu0 0.0
    %142 = vmatpush.msra.mxu0 0.0
    %143 = vmatpush.msra.mxu0 0.0
    %144 = vmatpush.msra.mxu0 %v127
    %145 = vmatpush.msra.mxu0 %v126
    %146 = vmatpush.msra.mxu0 %v125
    %147 = vmatpush.msra.mxu0 %v124
    %148 = vmatpush.msra.mxu0 %v123
    %149 = vmatpush.msra.mxu0 %v122
    %150 = vmatpush.msra.mxu0 %v121
    %151 = vmatpush.msra.mxu0 %v120
    %152 = vmatmul.f32.gmra.mxu0 %v134
    %v153 = vpop.f32.mrf.mxu0
    %v154 = vadd.f32 %v130, %v153
    %155 = vdwg.mxu0
    %v156 = vmax.f32 %v154, 0.0
    %v157 = vld [vmem:[#allocation8] sm:$0xff]
    %v158 = vld [vmem:[#allocation8 + $0x8] sm:$0xff]
    %v159 = vld [vmem:[#allocation8 + $0x10] sm:$0xff]
    %v160 = vld [vmem:[#allocation8 + $0x18] sm:$0xff]
    %v161 = vld [vmem:[#allocation8 + $0x20] sm:$0xff]
    %v162 = vld [vmem:[#allocation8 + $0x28] sm:$0xff]
    %v163 = vld [vmem:[#allocation8 + $0x30] sm:$0xff]
    %v164 = vld [vmem:[#allocation8 + $0x38] sm:$0xff]
    %v165 = vld [vmem:[%s6] sm:$0x1]
    %v167 = vperm.slane %v165, 0
    %v170 = vsel %vm132, %v156, 0
    %172 = vmatpush.msra.mxu0 0.0
    %173 = vmatpush.msra.mxu0 0.0
    %174 = vmatpush.msra.mxu0 0.0
    %175 = vmatpush.msra.mxu0 0.0
    %176 = vmatpush.msra.mxu0 0.0
    %177 = vmatpush.msra.mxu0 0.0
    %178 = vmatpush.msra.mxu0 0.0
    %179 = vmatpush.msra.mxu0 0.0
    %180 = vmatpush.msra.mxu0 %v164
    %181 = vmatpush.msra.mxu0 %v163
    %182 = vmatpush.msra.mxu0 %v162
    %183 = vmatpush.msra.mxu0 %v161
    %184 = vmatpush.msra.mxu0 %v160
    %185 = vmatpush.msra.mxu0 %v159
    %186 = vmatpush.msra.mxu0 %v158
    %187 = vmatpush.msra.mxu0 %v157
    %188 = vmatmul.f32.gmra.mxu0 %v170
    %v189 = vpop.f32.mrf.mxu0
    %v190 = vadd.f32 %v167, %v189
    %191 = vdwg.mxu0
    %v192 = vlaneseq
    %v193 = vand.u32 %v192, 127
    %vm194 = vcmp.lt.s32.totalorder %v193, 4
    %v195 = vsel %vm194, %v190, -1e+30
    %196 = vmax.xlane.f32.xlu0 %v195
    %v197 = vpop.xlane.xlu0 %196
    %v198 = vsub.f32 %v195, %v197
    %v199 = vmul.f32 %v198, 1.442695
    %v200 = vpow.pop %v199
    %201 = vadd.xlane.f32.xlu0 %v200
    %v202 = vpop.xlane.xlu0 %201
    %v203 = vrcp.pop %v202
    %v204 = vmul.f32 %v202, %v203
    %v205 = vsub.f32 2.0, %v204
    %v206 = vmul.f32 %v203, %v205
    %v207 = vmul.f32 %v200, %v206
    %v208 = vsel %vm194, %v207, %v190
    %209 = vst [vmem:[#allocation10] sm:$0xff] %v208
    // Predicated region
    $region46: #{tpu_custom_call.1} parent=1 // pred_check
      _
    $region47: #{tpu_custom_call.1} parent=1 // pred_check_branch
      %211 = sbr.rel (0) target = $region49
    $region48: #{tpu_custom_call.1} parent=1 // pred_region
      %213 = vsyncadd [#allocation4], 0
      %s215 = sshll.u32 [#allocation10], 4
      %s216 = int_to_ptr.vmem [resolvable:$true] %s215
      %s217 = sshll.u32 %s7, 4
      %s218 = int_to_ptr.hbm [resolvable:$true] %s217
      %220 = dma.vmem_to_hbm [thread:$0]  %s216, 128, %s218, [#allocation4]
    $region49: #{tpu_custom_call.1} parent=1 // pred_fallthru
      _
    // Predicated region
    $region50: #{tpu_custom_call.1} parent=1 // pred_check
      _
    $region51: #{tpu_custom_call.1} parent=1 // pred_check_branch
      %222 = sbr.rel (0) target = $region53
    $region52: #{tpu_custom_call.1} parent=1 // pred_region
      %224 = dma.done [#allocation4], 128
    $region53: #{tpu_custom_call.1} parent=1 // pred_fallthru
      _
    %225 = vsyncpa [#allocation3], 1
    %226 = vsyncpa [#allocation6], 1
    %227 = vsyncpa [#allocation9], 1
    %228 = vsyncpa [#allocation4], 1

</llo_original>
